<compile_context>
chip_gen: v7x
topology: tpu7x:2x2x1
jax: 0.10.0
libtpu: 0.0.40
codegen_flags: <defaults>
</compile_context>

<pallas_src>
import jax
import jax.numpy as jnp
from jax.experimental import pallas as pl
from jax.experimental.pallas import tpu as pltpu

_EPS = 1e-5


def _vmem_budgets():
    """(vmem_limit_bytes, tile_budget_bytes), generation aware."""
    try:
        phys = int(pltpu.get_tpu_info().vmem_capacity_bytes)
    except Exception:
        phys = 0
    if phys <= 0:
        phys = 64 * 1024 * 1024            # conservative fallback: v7x per-TC VMEM
    # ~25% headroom for compiler-internal scratch; never above 112 MiB.
    vmem_limit = min((phys * 3) // 4, 112 * 1024 * 1024)
    # Tile budget covers the double-buffered input + output blocks only
    # (chunked compute keeps fp32 temporaries in vregs), halved for safety.
    tile_budget = vmem_limit // 2
    return int(vmem_limit), int(tile_budget)


def _choose_fold(c, hw, itemsize):
    """Spatial fold factor k so that C*k fills a vreg's sublanes (8/16/32)."""
    target = 8 * max(1, 4 // max(1, itemsize))
    if c >= target:
        return 1
    k0 = -(-target // c)                   # ceil(target / c)
    for k in range(k0, min(2 * k0, hw) + 1):
        if hw % k == 0:
            return k
    return 1                               # no clean divisor: accept the padding


def _choose_chunk_width(c_eff):
    """Lane-chunk width: keep one fp32 chunk within a modest vreg footprint."""
    cw = (128 * 1024 // (c_eff * 4)) // 128 * 128
    return max(128, min(512, cw))


def _choose_spatial_tile(hw_eff, c_eff, itemsize, tile_budget, cw):
    """Spatial (lane) tile width T for a (C_eff, T) block."""
    per_col = c_eff * 4 * itemsize         # double-buffered input + output blocks
    t = (tile_budget // max(per_col, 1)) // cw * cw
    floor = 512 if 512 * per_col <= tile_budget else 128   # v5e roofline: >=512 lanes
    t = max(floor, t)
    if hw_eff <= t:
        # Full-extent block: always a legal block shape (no 128-divisibility needed).
        return hw_eff
    # Keep >= ~4 spatial grid steps so both v7x TensorCores stay busy and the
    # software pipeline has depth; large-VMEM chips still get multi-MiB tiles.
    cap = max(cw, (pl.cdiv(hw_eff, 4) // cw) * cw)
    return max(cw, min(t, cap))


def _make_kernel(c, k, t, cw):
    """Kernel for one (C*k, T) block: per-lane-column LayerNorm over C."""
    inv_c = 1.0 / c

    def _reduce_c(x):
        # x: (c*k, w) fp32 -> sum over the channel axis only -> (k, w).
        if k == 1:
            return jnp.sum(x, axis=0, keepdims=True)
        s = x[0:k, :]
        for ci in range(1, c):             # c is small whenever k > 1
            s = s + x[ci * k:(ci + 1) * k, :]
        return s

    def _bcast_c(s):
        # (k, w) -> (c*k, w): folded row r uses s[r % k].
        if k == 1:
            return s
        return jnp.tile(s, (c, 1))

    def kernel(x_ref, w_ref, b_ref, o_ref):
        w = w_ref[...].astype(jnp.float32)          # (c*k, 1): lane-broadcast
        b = b_ref[...].astype(jnp.float32)

        def do_chunk(start, width):
            x = x_ref[:, pl.ds(start, width)].astype(jnp.float32)
            mu = _reduce_c(x) * inv_c
            xc = x - _bcast_c(mu)
            var = _reduce_c(xc * xc) * inv_c        # biased (unbiased=False)
            inv = _bcast_c(jax.lax.rsqrt(var + _EPS))
            o_ref[:, pl.ds(start, width)] = (xc * inv * w + b).astype(o_ref.dtype)

        n_full = t // cw
        if n_full == 1:
            do_chunk(0, cw)
        elif n_full > 1:
            def body(i, carry):
                do_chunk(pl.multiple_of(i * cw, cw), cw)
                return carry
            jax.lax.fori_loop(0, n_full, body, 0, unroll=min(n_full, 8))
        rem = t % cw
        if rem:
            do_chunk(n_full * cw, rem)              # static tail chunk

    return kernel


def layernorm_nchw(x, weight, bias):
    """Forward of DFFreq LayerNorm(dim=C, bias=True, mu_sigma=False).

    x: (B, C, H, W) -> (B, C, H, W).  weight, bias: (C,).
    """
    B, C, H, W = x.shape
    hw = H * W
    itemsize = jnp.dtype(x.dtype).itemsize

    k = _choose_fold(C, hw, itemsize)
    c_eff = C * k
    hw_eff = hw // k

    cw = _choose_chunk_width(c_eff)
    vmem_limit, tile_budget = _vmem_budgets()
    t = _choose_spatial_tile(hw_eff, c_eff, itemsize, tile_budget, cw)
    cw = min(cw, t)

    # Contiguous reshapes only: no data movement, no transposes.
    x3 = x.reshape(B, c_eff, hw_eff)
    # Folded row r = ch*k + kk carries channel ch = r // k -> repeat params.
    w2 = jnp.repeat(weight, k).reshape(c_eff, 1)
    b2 = jnp.repeat(bias, k).reshape(c_eff, 1)

    grid = (B, pl.cdiv(hw_eff, t))

    y3 = pl.pallas_call(
        _make_kernel(C, k, t, cw),
        out_shape=jax.ShapeDtypeStruct((B, c_eff, hw_eff), x.dtype),
        grid=grid,
        in_specs=[
            pl.BlockSpec((pl.Squeezed(), c_eff, t), lambda b, j: (b, 0, j)),
            # Constant (0, 0) block index: weight/bias are DMA'd once, not per step.
            pl.BlockSpec((c_eff, 1), lambda b, j: (0, 0)),
            pl.BlockSpec((c_eff, 1), lambda b, j: (0, 0)),
        ],
        out_specs=pl.BlockSpec((pl.Squeezed(), c_eff, t), lambda b, j: (b, 0, j)),
        compiler_params=pltpu.CompilerParams(
            dimension_semantics=("parallel", "parallel"),
            vmem_limit_bytes=vmem_limit,
        ),
    )(x3, w2, b2)

    return y3.reshape(B, C, H, W)


def _reference_nchw(x, weight, bias):
    # Pure-JAX reference mirroring the PyTorch module (d4_to_3d -> LN -> d3_to_4d).
    B, C, H, W = x.shape
    xt = jnp.transpose(x, (0, 2, 3, 1)).reshape(B, H * W, C)
    mu = jnp.mean(xt, axis=-1, keepdims=True)
    var = jnp.mean((xt - mu) ** 2, axis=-1, keepdims=True)
    y = (xt - mu) / jnp.sqrt(var + _EPS) * weight + bias
    return y.reshape(B, H, W, C).transpose(0, 3, 1, 2)


if __name__ == "__main__":
    key = jax.random.PRNGKey(0)
    kx, kw, kb, kx2 = jax.random.split(key, 4)

    # Case 1: DFFreq-like small shape (small C exercises the sublane fold path).
    B, C, H, W = 2, 4, 16, 16
    x = jax.random.normal(kx, (B, C, H, W), dtype=jnp.float32)
    weight = 1.0 + 0.1 * jax.random.normal(kw, (C,), dtype=jnp.float32)
    bias = 0.1 * jax.random.normal(kb, (C,), dtype=jnp.float32)
    out = jax.block_until_ready(layernorm_nchw(x, weight, bias))
    ref = _reference_nchw(x, weight, bias)
    assert out.shape == (B, C, H, W)
    assert jnp.allclose(out, ref, atol=1e-5, rtol=1e-5), "mismatch vs reference (fold path)"

    # Case 2: C >= 8 (no fold) with a non-multiple-of-128 spatial extent.
    B2, C2, H2, W2 = 1, 16, 8, 24
    x2 = jax.random.normal(kx2, (B2, C2, H2, W2), dtype=jnp.float32)
    w_c2 = jnp.ones((C2,), dtype=jnp.float32)
    b_c2 = jnp.zeros((C2,), dtype=jnp.float32)
    out2 = jax.block_until_ready(layernorm_nchw(x2, w_c2, b_c2))
    ref2 = _reference_nchw(x2, w_c2, b_c2)
    assert jnp.allclose(out2, ref2, atol=1e-5, rtol=1e-5), "mismatch vs reference (no-fold path)"

    # TODO(synk): mu_sigma=True variant (returning mu/sigma maps) not emitted;
    # the module under test is constructed with mu_sigma=False.

    print("KERNEL_OK")
</pallas_src>

<mosaic_0001>
module attributes {stable_mosaic.version = 11 : i64} {
  func.func @kernel(%arg0: i32, %arg1: i32, %arg2: memref<1x8x128xf32, #tpu.memory_space<vmem>>, %arg3: memref<8x1xf32, #tpu.memory_space<vmem>>, %arg4: memref<8x1xf32, #tpu.memory_space<vmem>>, %arg5: memref<1x8x128xf32, #tpu.memory_space<vmem>>) attributes {dimension_semantics = [#tpu.dimension_semantics<parallel>, #tpu.dimension_semantics<parallel>], iteration_bounds = array<i64: 2, 1>, scalar_prefetch = 0 : i64, scratch_operands = 0 : i64, tpu.core_type = #tpu.core_type<tc>, window_params = [{transform_indices = @transform_0, window_bounds = array<i64: 1, 8, 128>}, {pipeline_mode = #tpu.pipeline_mode<synchronous>, transform_indices = @transform_1, window_bounds = array<i64: 8, 1>}, {pipeline_mode = #tpu.pipeline_mode<synchronous>, transform_indices = @transform_2, window_bounds = array<i64: 8, 1>}, {transform_indices = @transform_3, window_bounds = array<i64: 1, 8, 128>}]} {
    %c0 = arith.constant 0 : index
    %c0_0 = arith.constant 0 : index
    %0 = vector.load %arg3[%c0, %c0_0] : memref<8x1xf32, #tpu.memory_space<vmem>>, vector<8x1xf32>
    %c0_1 = arith.constant 0 : index
    %c0_2 = arith.constant 0 : index
    %1 = vector.load %arg4[%c0_1, %c0_2] : memref<8x1xf32, #tpu.memory_space<vmem>>, vector<8x1xf32>
    %c0_3 = arith.constant 0 : index
    %c0_4 = arith.constant 0 : index
    %c0_5 = arith.constant 0 : index
    %2 = vector.load %arg2[%c0_3, %c0_4, %c0_5] : memref<1x8x128xf32, #tpu.memory_space<vmem>>, vector<1x8x128xf32>
    %3 = vector.shape_cast %2 : vector<1x8x128xf32> to vector<8x128xf32>
    %4 = vector.extract_strided_slice %3 {offsets = [0, 0], sizes = [2, 128], strides = [1, 1]} : vector<8x128xf32> to vector<2x128xf32>
    %5 = vector.extract_strided_slice %3 {offsets = [2, 0], sizes = [2, 128], strides = [1, 1]} : vector<8x128xf32> to vector<2x128xf32>
    %6 = arith.addf %4, %5 : vector<2x128xf32>
    %7 = vector.extract_strided_slice %3 {offsets = [4, 0], sizes = [2, 128], strides = [1, 1]} : vector<8x128xf32> to vector<2x128xf32>
    %8 = arith.addf %6, %7 : vector<2x128xf32>
    %9 = vector.extract_strided_slice %3 {offsets = [6, 0], sizes = [2, 128], strides = [1, 1]} : vector<8x128xf32> to vector<2x128xf32>
    %10 = arith.addf %8, %9 : vector<2x128xf32>
    %cst = arith.constant 2.500000e-01 : f32
    %11 = vector.broadcast %cst : f32 to vector<2x128xf32>
    %12 = arith.mulf %10, %11 : vector<2x128xf32>
    %13 = tpu.concatenate %12, %12, %12, %12 in 0 : vector<2x128xf32>, vector<2x128xf32>, vector<2x128xf32>, vector<2x128xf32> -> vector<8x128xf32>
    %14 = arith.subf %3, %13 : vector<8x128xf32>
    %15 = arith.mulf %14, %14 : vector<8x128xf32>
    %16 = vector.extract_strided_slice %15 {offsets = [0, 0], sizes = [2, 128], strides = [1, 1]} : vector<8x128xf32> to vector<2x128xf32>
    %17 = vector.extract_strided_slice %15 {offsets = [2, 0], sizes = [2, 128], strides = [1, 1]} : vector<8x128xf32> to vector<2x128xf32>
    %18 = arith.addf %16, %17 : vector<2x128xf32>
    %19 = vector.extract_strided_slice %15 {offsets = [4, 0], sizes = [2, 128], strides = [1, 1]} : vector<8x128xf32> to vector<2x128xf32>
    %20 = arith.addf %18, %19 : vector<2x128xf32>
    %21 = vector.extract_strided_slice %15 {offsets = [6, 0], sizes = [2, 128], strides = [1, 1]} : vector<8x128xf32> to vector<2x128xf32>
    %22 = arith.addf %20, %21 : vector<2x128xf32>
    %cst_6 = arith.constant 2.500000e-01 : f32
    %23 = vector.broadcast %cst_6 : f32 to vector<2x128xf32>
    %24 = arith.mulf %22, %23 : vector<2x128xf32>
    %cst_7 = arith.constant 9.99999974E-6 : f32
    %25 = vector.broadcast %cst_7 : f32 to vector<2x128xf32>
    %26 = arith.addf %24, %25 : vector<2x128xf32>
    %27 = math.rsqrt %26 : vector<2x128xf32>
    %28 = tpu.concatenate %27, %27, %27, %27 in 0 : vector<2x128xf32>, vector<2x128xf32>, vector<2x128xf32>, vector<2x128xf32> -> vector<8x128xf32>
    %29 = arith.mulf %14, %28 : vector<8x128xf32>
    %30 = vector.broadcast %0 : vector<8x1xf32> to vector<8x128xf32>
    %31 = arith.mulf %29, %30 : vector<8x128xf32>
    %32 = vector.broadcast %1 : vector<8x1xf32> to vector<8x128xf32>
    %33 = arith.addf %31, %32 : vector<8x128xf32>
    %c0_8 = arith.constant 0 : index
    %c0_9 = arith.constant 0 : index
    %c0_10 = arith.constant 0 : index
    %34 = vector.load %arg5[%c0_8, %c0_9, %c0_10] : memref<1x8x128xf32, #tpu.memory_space<vmem>>, vector<1x8x128xf32>
    %35 = vector.shape_cast %34 : vector<1x8x128xf32> to vector<8x128xf32>
    %36 = vector.shape_cast %33 : vector<8x128xf32> to vector<1x8x128xf32>
    tpu.vector_store %arg5[%c0_8, %c0_9, %c0_10], %36 {strides = array<i32>} : memref<1x8x128xf32, #tpu.memory_space<vmem>>, vector<1x8x128xf32>,
    return
  }
  func.func @transform_0(%arg0: i32, %arg1: i32) -> (i32, i32, i32) {
    %c0_i32 = arith.constant 0 : i32
    %c0_i32_0 = arith.constant 0 : i32
    return %arg0, %c0_i32, %arg1 : i32, i32, i32
  }
  func.func @transform_1(%arg0: i32, %arg1: i32) -> (i32, i32) {
    %c0_i32 = arith.constant 0 : i32
    %c0_i32_0 = arith.constant 0 : i32
    %c0_i32_1 = arith.constant 0 : i32
    return %c0_i32, %c0_i32_0 : i32, i32
  }
  func.func @transform_2(%arg0: i32, %arg1: i32) -> (i32, i32) {
    %c0_i32 = arith.constant 0 : i32
    %c0_i32_0 = arith.constant 0 : i32
    %c0_i32_1 = arith.constant 0 : i32
    return %c0_i32, %c0_i32_0 : i32, i32
  }
  func.func @transform_3(%arg0: i32, %arg1: i32) -> (i32, i32, i32) {
    %c0_i32 = arith.constant 0 : i32
    %c0_i32_0 = arith.constant 0 : i32
    return %arg0, %c0_i32, %arg1 : i32, i32, i32
  }
}

</mosaic_0001>

<llo_original>
// kernel: tpu_custom_call.1
$region0: #{tpu_custom_call.1}
  #allocation0 [shape = 'u32[]', space=smem, size = 0x4, offset = 0x4, fixed_abs, tag = 'smem constant byte address 0x4 - core index']
  #allocation1 [shape = 'u32[144,128]{1,0:T(1,128)}', space=vmem, size = 0x12000, scoped, tag = 'internal scratch']
  %s0 = inlined_call_operand.vmem [shape: f32[2,8,128], index: 0, kind: input, shape index: {}]
  %s1 = inlined_call_operand.vmem [shape: f32[8,1], index: 1, kind: input, shape index: {}]
  %s2 = inlined_call_operand.vmem [shape: f32[8,1], index: 2, kind: input, shape index: {}]
  %s3 = inlined_call_operand.hbm [shape: f32[2,8,128], index: 3, kind: output, shape index: {}]
  %s4 = sld [smem:[#allocation0]]
  $region45: #{tpu_custom_call.1} parent=0
    _
  %s6 = ssub.s32 1, %s4
  %s7 = scalar_select 0, %s6, %s4
  $region1: #{tpu_custom_call.1} parent=0
    #allocation2 [shape = 'u8[8192]{0}', space=vmem, size = 0x2000, scoped, tag = 'output window, operand 0']
    #allocation3 [shape = 's32[2]{0}', space=sflag, size = 0x8, scoped, tag = 'scoped memory for tpu_custom_call.1']
    %8 = vsyncpa [#allocation3], 0
    %s9 = scalar_lea.sflag [#allocation3], 1
    %10 = vsyncpa %s9, 0
    loop: start=0, step=1, limit=4
    $region2: #{tpu_custom_call.1} parent=1 // loop_pre_header
      _
    $region3: #{tpu_custom_call.1} parent=1 // loop_header
      %s12 = sphi 0, %s16
      %p13 = scmp.ge.s32.totalorder %s12, 4
      %s19 = sphi 0, %s31
      %s20 = sphi 0, %s27
      %s21 = sphi 0, %s19
      %s22 = sphi 0, %s20
      %s23 = sphi 0, %s21
      %s24 = sphi 0, %s22
      %s36 = sphi 0, %s38
      %s39 = sphi 0, %s36
      %s40 = sphi 0, %s39
      %s56 = sphi 0, %s40
      %s60 = sphi 0, %s60
      %s62 = sphi 0, %s60
      %s63 = sphi 0, %s62
      %s77 = sphi 0, %s63
      %s81 = sphi 0, %s81
      %s83 = sphi 0, %s81
      %s84 = sphi 0, %s83
      %s98 = sphi 0, %s84
      %s106 = sphi 0, %s108
      %s109 = sphi 0, %s106
      %s110 = sphi 0, %s109
      %s126 = sphi 0, %s110
    $region4: #{tpu_custom_call.1} parent=1 // loop_header_branch
      %15 = sbr.rel (%p13) target = $region8
    $region5: #{tpu_custom_call.1} parent=1 // loop_body
      %s17 = ssub.s32 %s12, 1
      %s18 = ssub.s32 %s12, 2
      %s25 = sadd.s32 1, %s20
      %p26 = scmp.ge.s32.totalorder %s25, 1
      %s27 = scalar_select %p26, 0, %s25
      %s28 = sadd.s32 1, %s19
      %s29 = scalar_select %p26, %s28, %s19
      %p30 = scmp.ge.s32.totalorder %s29, 2
      %s31 = scalar_select %p30, 0, %s29
      %s32 = ssub.s32 %s19, %s31
      %s33 = ssub.s32 %s20, %s27
      %s34 = sor.u32 %s32, %s33
      %p35 = scmp.eq.s32.totalorder %s34, 0
      %s37 = sadd.s32 %s36, 1
      %s38 = scalar_select %p35, %s36, %s37
      %p41 = pneg %p35
      %p42 = scmp.eq.s32.totalorder %s12, 1
      %p43 = por %p41, %p42
      %p44 = scmp.ne.s32.totalorder %s36, %s39
      %p45 = scmp.eq.s32.totalorder %s12, 0
      %p46 = por %p44, %p45
      %p47 = scmp.ne.s32.totalorder %s36, %s39
      %p48 = scmp.eq.s32.totalorder %s17, 1
      %p49 = por %p47, %p48
      %p50 = scmp.ne.s32.totalorder %s39, %s40
      %p51 = scmp.eq.s32.totalorder %s17, 0
      %p52 = por %p50, %p51
      %p53 = scmp.ne.s32.totalorder %s39, %s40
      %p54 = scmp.eq.s32.totalorder %s18, 1
      %p55 = por %p53, %p54
      %p57 = scmp.ne.s32.totalorder %s40, %s56
      %p58 = scmp.eq.s32.totalorder %s18, 0
      %p59 = por %p57, %p58
      %s61 = sadd.s32 %s60, 1
      %p64 = scmp.eq.s32.totalorder %s12, 1
      %p65 = scmp.ne.s32.totalorder %s60, %s62
      %p66 = scmp.eq.s32.totalorder %s12, 0
      %p67 = por %p65, %p66
      %p68 = scmp.ne.s32.totalorder %s60, %s62
      %p69 = scmp.eq.s32.totalorder %s17, 1
      %p70 = por %p68, %p69
      %p71 = scmp.ne.s32.totalorder %s62, %s63
      %p72 = scmp.eq.s32.totalorder %s17, 0
      %p73 = por %p71, %p72
      %p74 = scmp.ne.s32.totalorder %s62, %s63
      %p75 = scmp.eq.s32.totalorder %s18, 1
      %p76 = por %p74, %p75
      %p78 = scmp.ne.s32.totalorder %s63, %s77
      %p79 = scmp.eq.s32.totalorder %s18, 0
      %p80 = por %p78, %p79
      %s82 = sadd.s32 %s81, 1
      %p85 = scmp.eq.s32.totalorder %s12, 1
      %p86 = scmp.ne.s32.totalorder %s81, %s83
      %p87 = scmp.eq.s32.totalorder %s12, 0
      %p88 = por %p86, %p87
      %p89 = scmp.ne.s32.totalorder %s81, %s83
      %p90 = scmp.eq.s32.totalorder %s17, 1
      %p91 = por %p89, %p90
      %p92 = scmp.ne.s32.totalorder %s83, %s84
      %p93 = scmp.eq.s32.totalorder %s17, 0
      %p94 = por %p92, %p93
      %p95 = scmp.ne.s32.totalorder %s83, %s84
      %p96 = scmp.eq.s32.totalorder %s18, 1
      %p97 = por %p95, %p96
      %p99 = scmp.ne.s32.totalorder %s84, %s98
      %p100 = scmp.eq.s32.totalorder %s18, 0
      %p101 = por %p99, %p100
      %s102 = ssub.s32 %s19, %s31
      %s103 = ssub.s32 %s20, %s27
      %s104 = sor.u32 %s102, %s103
      %p105 = scmp.eq.s32.totalorder %s104, 0
      %s107 = sadd.s32 %s106, 1
      %s108 = scalar_select %p105, %s106, %s107
      %p111 = pneg %p105
      %p112 = scmp.eq.s32.totalorder %s12, 1
      %p113 = por %p111, %p112
      %p114 = scmp.ne.s32.totalorder %s106, %s109
      %p115 = scmp.eq.s32.totalorder %s12, 0
      %p116 = por %p114, %p115
      %p117 = scmp.ne.s32.totalorder %s106, %s109
      %p118 = scmp.eq.s32.totalorder %s17, 1
      %p119 = por %p117, %p118
      %p120 = scmp.ne.s32.totalorder %s109, %s110
      %p121 = scmp.eq.s32.totalorder %s17, 0
      %p122 = por %p120, %p121
      %p123 = scmp.ne.s32.totalorder %s109, %s110
      %p124 = scmp.eq.s32.totalorder %s18, 1
      %p125 = por %p123, %p124
      %p127 = scmp.ne.s32.totalorder %s110, %s126
      %p128 = scmp.eq.s32.totalorder %s18, 0
      %p129 = por %p127, %p128
      %p130 = scmp.le.s32.totalorder 1, %s12
      %p131 = scmp.lt.s32.totalorder %s12, 3
      %p132 = pnand %p130, %p131
      %p133 = pneg %p132
      // Predicated region
      $region9: #{tpu_custom_call.1} parent=5 // pred_check
        _
      $region10: #{tpu_custom_call.1} parent=5 // pred_check_branch
        %135 = sbr.rel (%p132) target = $region12
      $region11: #{tpu_custom_call.1} parent=5 // pred_region
        %s136 = ssub.s32 %s12, 1
        // Predicated region
        $region13: #{tpu_custom_call.1} parent=11 // pred_check
          %p137 = pneg %p73
        $region14: #{tpu_custom_call.1} parent=11 // pred_check_branch
          %139 = sbr.rel (%p137) target = $region16
        $region15: #{tpu_custom_call.1} parent=11 // pred_region
          _
        $region16: #{tpu_custom_call.1} parent=11 // pred_fallthru
          _
        // Predicated region
        $region17: #{tpu_custom_call.1} parent=11 // pred_check
          %p140 = pneg %p94
        $region18: #{tpu_custom_call.1} parent=11 // pred_check_branch
          %142 = sbr.rel (%p140) target = $region20
        $region19: #{tpu_custom_call.1} parent=11 // pred_region
          _
        $region20: #{tpu_custom_call.1} parent=11 // pred_fallthru
          _
      $region12: #{tpu_custom_call.1} parent=5 // pred_fallthru
        _
      %p143 = scmp.lt.s32.totalorder %s12, 2
      // Predicated region
      $region21: #{tpu_custom_call.1} parent=5 // pred_check
        %p144 = pneg %p143
      $region22: #{tpu_custom_call.1} parent=5 // pred_check_branch
        %146 = sbr.rel (%p144) target = $region24
      $region23: #{tpu_custom_call.1} parent=5 // pred_region
        // Predicated region
        $region25: #{tpu_custom_call.1} parent=23 // pred_check
          %p147 = pneg %p46
        $region26: #{tpu_custom_call.1} parent=23 // pred_check_branch
          %149 = sbr.rel (%p147) target = $region28
        $region27: #{tpu_custom_call.1} parent=23 // pred_region
          %p150 = scmp.lt.s32.totalorder %s19, 1
          %s151 = scalar_select %p150, %s19, 1
          %p152 = scmp.lt.s32.totalorder %s20, 0
          %s153 = scalar_select %p152, %s20, 0
          %s154 = sadd.s32 %s153, %s151
          %s155 = smul.addr %s154, 8
          %s156 = scalar_lea.vmem %s0, %s155
        $region28: #{tpu_custom_call.1} parent=23 // pred_fallthru
          _
      $region24: #{tpu_custom_call.1} parent=5 // pred_fallthru
        _
      %p157 = scmp.le.s32.totalorder 1, %s12
      %p158 = scmp.lt.s32.totalorder %s12, 3
      %p159 = pnand %p157, %p158
      %p160 = pneg %p159
      // Predicated region
      $region29: #{tpu_custom_call.1} parent=5 // pred_check
        _
      $region30: #{tpu_custom_call.1} parent=5 // pred_check_branch
        %162 = sbr.rel (%p159) target = $region32
      $region31: #{tpu_custom_call.1} parent=5 // pred_region
        %s163 = ssub.s32 %s12, 1
        %p164 = scmp.lt.s32.totalorder %s21, 1
        %s165 = scalar_select %p164, %s21, 1
        %p166 = scmp.lt.s32.totalorder %s22, 0
        %s167 = scalar_select %p166, %s22, 0
        %s168 = sadd.s32 %s167, %s165
        %s169 = smul.addr %s168, 8
        %s170 = scalar_lea.vmem %s0, %s169
        %p171 = pneg %p52
        %p172 = pneg %p49
        %p173 = pneg %p73
        %p174 = pneg %p70
        %p175 = pneg %p94
        %p176 = pneg %p91
        %p177 = pneg %p122
        %p178 = pneg %p119
        %s179 = sand.u32 %s109, 1
        %s180 = scalar_lea.sflag [#allocation3], %s179
        %s181 = sand.u32 %s109, 1
        %s182 = smul.addr %s181, 8
        %s183 = scalar_lea.vmem [#allocation2], %s182
        %p184 = scmp.lt.s32.totalorder %s21, 1
        %s185 = scalar_select %p184, %s21, 1
        %p186 = scmp.lt.s32.totalorder %s22, 0
        %s187 = scalar_select %p186, %s22, 0
        %s188 = sadd.s32 %s187, %s185
        %s189 = smul.addr %s188, 8
        %s190 = scalar_lea.vmem %s0, %s189
        %v191 = vld [vmem:[%s1] sm:$0xff]
        %v192 = vld [vmem:[%s2] sm:$0xff]
        %v193 = vld [vmem:[%s190] sm:$0xff]
        %v195 = vrot.slane %v193, 2
        %v197 = vadd.f32 %v193, %v195
        %v198 = vrot.slane %v193, 4
        %v200 = vadd.f32 %v197, %v198
        %v201 = vrot.slane %v193, 6
        %v203 = vadd.f32 %v200, %v201
        %v204 = vmul.f32 %v203, 0.25
        %v206 = vrot.slane %v204, 6
        %v208 = vrot.slane %v204, 4
        %v210 = vrot.slane %v204, 2
        %vm212 = vcmask 1041408
        %v213 = vsel %vm212, %v204, %v206
        %vm214 = vcmask 1043456
        %v215 = vsel %vm214, %v213, %v208
        %vm216 = vcmask 1045504
        %v217 = vsel %vm216, %v215, %v210
        %v218 = vsub.f32 %v193, %v217
        %v219 = vmul.f32 %v218, %v218
        %v221 = vrot.slane %v219, 2
        %v223 = vadd.f32 %v219, %v221
        %v224 = vrot.slane %v219, 4
        %v226 = vadd.f32 %v223, %v224
        %v227 = vrot.slane %v219, 6
        %v229 = vadd.f32 %v226, %v227
        %v230 = vmul.f32 %v229, 0.25
        %v231 = vadd.f32 %v230, 1e-05
        %v232 = vrsqrt.pop %v231
        %v234 = vrot.slane %v232, 6
        %v236 = vrot.slane %v232, 4
        %v238 = vrot.slane %v232, 2
        %v240 = vsel %vm212, %v232, %v234
        %v241 = vsel %vm214, %v240, %v236
        %v242 = vsel %vm216, %v241, %v238
        %v243 = vmul.f32 %v218, %v242
        %245 = vset.pattern.permute.xlu0 0
        %246 = vperm.xlu0 %245, %v191
        %v247 = vpop.permute.xlu0 %246
        %v249 = vmul.f32 %v243, %v247
        %251 = vset.pattern.permute.xlu0 0
        %252 = vperm.xlu0 %251, %v192
        %v253 = vpop.permute.xlu0 %252
        %v255 = vadd.f32 %v249, %v253
        %256 = vst [vmem:[%s183] sm:$0xff] %v255
        %s257 = sand.u32 %s109, 1
        %s258 = scalar_lea.sflag [#allocation3], %s257
        %s259 = sand.u32 %s109, 1
        %s260 = smul.addr %s259, 8
        %s261 = scalar_lea.vmem [#allocation2], %s260
        // Predicated region
        $region33: #{tpu_custom_call.1} parent=31 // pred_check
          %p262 = pneg %p119
        $region34: #{tpu_custom_call.1} parent=31 // pred_check_branch
          %264 = sbr.rel (%p262) target = $region36
        $region35: #{tpu_custom_call.1} parent=31 // pred_region
          %s266 = ssub.s32 128, 128
          %267 = vsyncadd %s258, %s266
          %s268 = sadd.s32 %s22, %s21
          %s269 = smul.addr %s268, 128
          %s270 = scalar_lea.hbm %s3, %s269
          %s272 = sshll.u32 %s261, 4
          %s273 = int_to_ptr.vmem [resolvable:$true] %s272
          %275 = dma.vmem_to_hbm [thread:$0]  %s273, 128, %s270, %s258
        $region36: #{tpu_custom_call.1} parent=31 // pred_fallthru
          _
      $region32: #{tpu_custom_call.1} parent=5 // pred_fallthru
        _
      %p276 = scmp.le.s32.totalorder 2, %s12
      // Predicated region
      $region37: #{tpu_custom_call.1} parent=5 // pred_check
        %p277 = pneg %p276
      $region38: #{tpu_custom_call.1} parent=5 // pred_check_branch
        %279 = sbr.rel (%p277) target = $region40
      $region39: #{tpu_custom_call.1} parent=5 // pred_region
        %s280 = ssub.s32 %s12, 2
        // Predicated region
        $region41: #{tpu_custom_call.1} parent=39 // pred_check
          %p281 = pneg %p125
        $region42: #{tpu_custom_call.1} parent=39 // pred_check_branch
          %283 = sbr.rel (%p281) target = $region44
        $region43: #{tpu_custom_call.1} parent=39 // pred_region
          %s284 = sand.u32 %s110, 1
          %s285 = scalar_lea.sflag [#allocation3], %s284
          %s286 = sand.u32 %s110, 1
          %s287 = smul.addr %s286, 8
          %s288 = scalar_lea.vmem [#allocation2], %s287
          %289 = dma.done %s285, 128
        $region44: #{tpu_custom_call.1} parent=39 // pred_fallthru
          _
      $region40: #{tpu_custom_call.1} parent=5 // pred_fallthru
        _
    $region6: #{tpu_custom_call.1} parent=1 // loop_footer
      %s16 = sadd.s32 1, %s12
    $region7: #{tpu_custom_call.1} parent=1 // loop_footer_branch
      %11 = sbr.rel target = $region3
    $region8: #{tpu_custom_call.1} parent=1 // loop_exit
      _
    %290 = vsyncpa [#allocation3], 1
    %s291 = scalar_lea.sflag [#allocation3], 1
    %292 = vsyncpa %s291, 1

</llo_original>
